<compile_context>
chip_gen: v5e
topology: v5e:2x2
jax: 0.10.0
libtpu: 0.0.40
codegen_flags: <defaults>
</compile_context>

<pallas_src>
import numpy as np
import jax
import jax.numpy as jnp
from jax import lax
from jax.experimental import pallas as pl
from jax.experimental.pallas import tpu as pltpu


def _interp_matrix(out_size: int, in_size: int) -> np.ndarray:
    """1-D bilinear interpolation matrix matching
    F.interpolate(..., mode='bilinear', align_corners=False) along one axis."""
    if out_size == in_size:
        return np.eye(out_size, dtype=np.float32)
    scale = in_size / out_size
    src = (np.arange(out_size, dtype=np.float64) + 0.5) * scale - 0.5
    src = np.maximum(src, 0.0)                       # PyTorch clamps negative src coords to 0
    i0 = np.minimum(np.floor(src).astype(np.int64), in_size - 1)
    i1 = np.minimum(i0 + 1, in_size - 1)
    w1 = src - i0
    w0 = 1.0 - w1
    m = np.zeros((out_size, in_size), dtype=np.float64)
    np.add.at(m, (np.arange(out_size), i0), w0)
    np.add.at(m, (np.arange(out_size), i1), w1)
    return m.astype(np.float32)


def _chip_defaults():
    """(target tile bytes, vmem_limit_bytes) per TPU generation."""
    try:
        kind = jax.devices()[0].device_kind.lower()
    except Exception:
        kind = ""
    if "v7" in kind or "tpu7" in kind or "7x" in kind:
        return 7 << 20, 48 << 20          # 3.2 TB/s HBM, 64 MiB VMEM/TC
    if "v6" in kind:
        return 4 << 20, 32 << 20          # 1.4 TB/s HBM, 128 MiB VMEM
    # v5e and unknown chips: conservative (near roofline already at 2-4 MiB)
    return 3 << 20, 24 << 20


def _plan(B, C, Ht, Wt, hs, itemsize, tile_h_req):
    c0 = int(0.1 * Ht)
    c1 = int(0.1 * Wt)
    if c0 < 1 or c1 < 1:
        # PyTorch's epe_map[:, 0:-0, 0:-0] would be an empty slice -> NaN mean.
        raise ValueError("realEPE crop is 0 for H or W < 10; PyTorch reference is NaN there.")
    h_lo, h_hi = c0, Ht - c0
    w_lo, w_hi = c1, Wt - c1
    n_kept = B * (h_hi - h_lo) * (w_hi - w_lo)

    budget, vmem_limit = _chip_defaults()
    max_tile = max(8, pl.cdiv(Ht, 8) * 8)
    if tile_h_req is None:
        tile_h = max(8, (budget // max(1, C * Wt * itemsize)) // 8 * 8)
    else:
        tile_h = max(8, (int(tile_h_req) // 8) * 8)
    tile_h = min(tile_h, max_tile)

    def blocks(th):
        fb = h_lo // th                   # H-blocks entirely inside the top border
        lb = pl.cdiv(h_hi, th)            # are never fetched
        return fb, lb, lb - fb

    first_blk, last_blk, grid_h = blocks(tile_h)
    # v7x has two TensorCores: keep the "parallel" grid at >= 2 cells.
    while B * grid_h < 2 and tile_h > 8:
        tile_h = max(8, ((tile_h // 2) // 8) * 8)
        first_blk, last_blk, grid_h = blocks(tile_h)

    fuse = (Wt % 128 == 0)                # lane-aligned per-channel slices

    # Rough VMEM accounting: target tile double-buffered + resident operands.
    need = (2 * C * tile_h * Wt * itemsize      # target tiles (double-buffered)
            + 2 * C * hs * Wt * 4               # hoisted low_w block
            + 2 * tile_h * hs * 4               # rmat tile
            + 4 * 8 * Wt * 4                    # colmask + output row (+ padding)
            + (1 << 20))                        # slack / internal scratch
    vmem_limit = min(max(vmem_limit, int(1.5 * need)), 56 << 20)

    return dict(tile_h=tile_h, first_blk=first_blk, last_blk=last_blk,
                grid_h=grid_h, h_lo=h_lo, h_hi=h_hi, w_lo=w_lo, w_hi=w_hi,
                n_kept=n_kept, fuse=fuse, vmem_limit=vmem_limit)


def _make_kernel(C, Wt, tile_h, first_blk, h_lo, h_hi, fuse):
    def kernel(tgt_ref, loww_ref, rmat_ref, cmask_ref, out_ref):
        # tgt_ref  : (C, tile_h, Wt)   target tile (input dtype)
        # loww_ref : (hs, C*Wt) fused  |  (C, hs, Wt) per-channel   (f32)
        # rmat_ref : (tile_h, hs)      row-interpolation tile       (f32)
        # cmask_ref: (1, Wt)           column crop mask             (f32)
        ht = pl.program_id(1)
        nh = pl.num_programs(1)
        rmat = rmat_ref[...]

        if fuse:
            # Single MXU dot per tile, all channels at once.
            up = jnp.dot(rmat, loww_ref[...], preferred_element_type=jnp.float32)

        sq = None
        for c in range(C):                       # C is small & static
            if fuse:
                up_c = up[:, c * Wt:(c + 1) * Wt]                       # lane-aligned slice
            else:
                up_c = jnp.dot(rmat, loww_ref[c], preferred_element_type=jnp.float32)
            d = tgt_ref[c].astype(jnp.float32) - up_c                   # cast fuses into sub
            sq = d * d if sq is None else sq + d * d

        # Column crop: multiply by a resident 0/1 mask (W is never OOB -> no NaN risk).
        sq = sq * cmask_ref[...]

        is_edge = jnp.logical_or(ht == 0, ht == nh - 1)

        @pl.when(jnp.logical_not(is_edge))
        def _():
            # Interior tiles lie fully inside [h_lo, h_hi) and contain no padded
            # rows: no row mask needed at all.
            out_ref[0, 0, :, :] = jnp.sum(jnp.sqrt(sq), axis=0, keepdims=True)

        @pl.when(is_edge)
        def _():
            # Edge tiles: mask the 10% border rows and any padded/garbage rows of
            # a partial last block.  Mask BEFORE sqrt with a select (NaN-safe).
            row0 = (ht + first_blk) * tile_h
            rows = row0 + lax.broadcasted_iota(jnp.int32, (tile_h, Wt), 0)
            keep = jnp.logical_and(rows >= h_lo, rows < h_hi)
            epe = jnp.sqrt(jnp.where(keep, sq, jnp.float32(0.0)))
            out_ref[0, 0, :, :] = jnp.sum(epe, axis=0, keepdims=True)

    return kernel


def _build_call(B, C, Ht, Wt, hs, plan):
    tile_h, first_blk = plan["tile_h"], plan["first_blk"]
    grid_h, fuse = plan["grid_h"], plan["fuse"]
    kernel = _make_kernel(C, Wt, tile_h, first_blk, plan["h_lo"], plan["h_hi"], fuse)

    if fuse:
        loww_spec = pl.BlockSpec((None, hs, C * Wt), lambda b, h: (b, 0, 0))
    else:
        loww_spec = pl.BlockSpec((None, C, hs, Wt), lambda b, h: (b, 0, 0, 0))

    grid_spec = pltpu.PrefetchScalarGridSpec(
        num_scalar_prefetch=0,
        grid=(B, grid_h),
        in_specs=[
            # target: one (C, tile_h, Wt) spatial tile per grid cell; H-blocks fully
            # inside the 10% border are never fetched (grid starts at first_blk).
            pl.BlockSpec((None, C, tile_h, Wt), lambda b, h: (b, 0, h + first_blk, 0)),
            # hoisted low_w: per-batch block, re-fetched only when b changes
            loww_spec,
            # row-interpolation matrix: same H tiling as the target (zero-padded)
            pl.BlockSpec((tile_h, hs), lambda b, h: (h + first_blk, 0)),
            # column crop mask: tiny resident block
            pl.BlockSpec((1, Wt), lambda b, h: (0, 0)),
        ],
        out_specs=pl.BlockSpec((1, 1, 1, Wt), lambda b, h: (b, h, 0, 0)),
    )

    return pl.pallas_call(
        kernel,
        out_shape=jax.ShapeDtypeStruct((B, grid_h, 1, Wt), jnp.float32),
        grid_spec=grid_spec,
        compiler_params=pltpu.CompilerParams(
            dimension_semantics=("parallel", "parallel"),   # no carried state
            vmem_limit_bytes=plan["vmem_limit"],
        ),
    )


def real_epe(output, target, tile_h=None):
    """output: (B, C, h, w) low-res flow; target: (B, C, H, W). Returns scalar f32."""
    output = jnp.asarray(output)
    target = jnp.asarray(target)
    B, C, hs, ws = output.shape
    Bt, Ct, Ht, Wt = target.shape
    assert B == Bt and C == Ct, "output/target batch & channel dims must match"

    plan = _plan(B, C, Ht, Wt, hs, jnp.dtype(target.dtype).itemsize, tile_h)

    # Host-side interpolation matrices.
    rmat_np = _interp_matrix(Ht, hs)                      # (Ht, hs)
    h_pad = plan["last_blk"] * plan["tile_h"]
    if h_pad > Ht:                                        # keep every rmat block full
        rmat_np = np.pad(rmat_np, ((0, h_pad - Ht), (0, 0)))
    cmat_np = _interp_matrix(Wt, ws)                      # (Wt, ws)
    cmask_np = np.zeros((1, Wt), np.float32)
    cmask_np[0, plan["w_lo"]:plan["w_hi"]] = 1.0

    # Hoisted, H-tile-invariant column interpolation (tiny: B*C*hs*Wt floats).
    low_w = jnp.einsum("bchw,Ww->bchW", output.astype(jnp.float32),
                       jnp.asarray(cmat_np), precision=lax.Precision.HIGHEST)
    if plan["fuse"]:
        # (B, hs, C*Wt): one MXU dot per tile; per-channel slices at Wt boundaries.
        low_w = jnp.transpose(low_w, (0, 2, 1, 3)).reshape(B, hs, C * Wt)

    fn = _build_call(B, C, Ht, Wt, hs, plan)
    partials = fn(target, low_w, jnp.asarray(rmat_np), jnp.asarray(cmask_np))
    return jnp.sum(partials) / jnp.float32(plan["n_kept"])


def _reference(output, target):
    """Pure-JAX realEPE reference (same bilinear matrices as F.interpolate)."""
    B, C, hs, ws = output.shape
    _, _, Ht, Wt = target.shape
    rmat = jnp.asarray(_interp_matrix(Ht, hs))
    cmat = jnp.asarray(_interp_matrix(Wt, ws))
    up = jnp.einsum('th,bchw->bctw', rmat, output.astype(jnp.float32),
                    precision=lax.Precision.HIGHEST)
    up = jnp.einsum('bctw,qw->bctq', up, cmat, precision=lax.Precision.HIGHEST)
    d = target.astype(jnp.float32) - up
    epe = jnp.sqrt(jnp.sum(d * d, axis=1))                # (B, Ht, Wt)
    c0, c1 = int(0.1 * Ht), int(0.1 * Wt)
    return jnp.mean(epe[:, c0:Ht - c0, c1:Wt - c1])


if __name__ == "__main__":
    key = jax.random.PRNGKey(0)
    k1, k2, k3, k4 = jax.random.split(key, 4)

    # Case 1: small, non-lane-aligned width -> per-channel dot path, single edge tile.
    B, C, hs, ws, Ht, Wt = 2, 2, 8, 8, 16, 16
    out1 = jax.random.normal(k1, (B, C, hs, ws), dtype=jnp.float32)
    tgt1 = jax.random.normal(k2, (B, C, Ht, Wt), dtype=jnp.float32)
    l1 = real_epe(out1, tgt1)
    jax.block_until_ready(l1)
    r1 = _reference(out1, tgt1)
    assert jnp.allclose(l1, r1, rtol=1e-4, atol=1e-4), (l1, r1)

    # Case 2: lane-aligned width -> fused single-matmul path; tile_h=32 gives
    # interior (mask-free) tiles plus two edge tiles.
    B, C, hs, ws, Ht, Wt = 1, 2, 32, 32, 128, 128
    out2 = jax.random.normal(k3, (B, C, hs, ws), dtype=jnp.float32)
    tgt2 = jax.random.normal(k4, (B, C, Ht, Wt), dtype=jnp.float32)
    l2 = real_epe(out2, tgt2, tile_h=32)
    jax.block_until_ready(l2)
    r2 = _reference(out2, tgt2)
    assert jnp.allclose(l2, r2, rtol=1e-4, atol=1e-4), (l2, r2)

    # Case 3: same inputs, automatic tile size -> exercises the B*grid_h >= 2
    # (megacore) tile-shrink path.
    l3 = real_epe(out2, tgt2)
    jax.block_until_ready(l3)
    assert jnp.allclose(l3, r2, rtol=1e-4, atol=1e-4), (l3, r2)

    print("KERNEL_OK")
</pallas_src>

<mosaic_0001>
module attributes {stable_mosaic.version = 11 : i64} {
  func.func @kernel(%arg0: i32, %arg1: i32, %arg2: memref<1x2x16x16xf32, #tpu.memory_space<vmem>>, %arg3: memref<1x2x8x16xf32, #tpu.memory_space<vmem>>, %arg4: memref<16x8xf32, #tpu.memory_space<vmem>>, %arg5: memref<1x16xf32, #tpu.memory_space<vmem>>, %arg6: memref<1x1x1x16xf32, #tpu.memory_space<vmem>>) attributes {dimension_semantics = [#tpu.dimension_semantics<parallel>, #tpu.dimension_semantics<parallel>], iteration_bounds = array<i64: 2, 1>, scalar_prefetch = 0 : i64, scratch_operands = 0 : i64, tpu.core_type = #tpu.core_type<tc>, window_params = [{transform_indices = @transform_0, window_bounds = array<i64: 1, 2, 16, 16>}, {transform_indices = @transform_1, window_bounds = array<i64: 1, 2, 8, 16>}, {transform_indices = @transform_2, window_bounds = array<i64: 16, 8>}, {pipeline_mode = #tpu.pipeline_mode<synchronous>, transform_indices = @transform_3, window_bounds = array<i64: 1, 16>}, {transform_indices = @transform_4, window_bounds = array<i64: 1, 1, 1, 16>}]} {
    %c0 = arith.constant 0 : index
    %c0_0 = arith.constant 0 : index
    %0 = vector.load %arg4[%c0, %c0_0] : memref<16x8xf32, #tpu.memory_space<vmem>>, vector<16x8xf32>
    %c0_1 = arith.constant 0 : index
    %c0_2 = arith.constant 0 : index
    %c0_3 = arith.constant 0 : index
    %c0_4 = arith.constant 0 : index
    %1 = vector.load %arg3[%c0_1, %c0_2, %c0_3, %c0_4] : memref<1x2x8x16xf32, #tpu.memory_space<vmem>>, vector<1x1x8x16xf32>
    %2 = vector.shape_cast %1 : vector<1x1x8x16xf32> to vector<8x16xf32>
    %cst = arith.constant dense<0.000000e+00> : vector<16x16xf32>
    %3 = tpu.matmul %0, %2, %cst {dimension_numbers = #tpu.dot_dimension_numbers<[1], [0], [0], [1], [0, 0, 1, 1], [], []>} : vector<16x8xf32>, vector<8x16xf32>, vector<16x16xf32> -> vector<16x16xf32>
    %c0_5 = arith.constant 0 : index
    %c0_6 = arith.constant 0 : index
    %c0_7 = arith.constant 0 : index
    %c0_8 = arith.constant 0 : index
    %4 = vector.load %arg2[%c0_5, %c0_6, %c0_7, %c0_8] : memref<1x2x16x16xf32, #tpu.memory_space<vmem>>, vector<1x1x16x16xf32>
    %5 = vector.shape_cast %4 : vector<1x1x16x16xf32> to vector<16x16xf32>
    %6 = arith.subf %5, %3 : vector<16x16xf32>
    %7 = arith.mulf %6, %6 : vector<16x16xf32>
    %c0_9 = arith.constant 0 : index
    %c1 = arith.constant 1 : index
    %c0_10 = arith.constant 0 : index
    %c0_11 = arith.constant 0 : index
    %8 = vector.load %arg3[%c0_9, %c1, %c0_10, %c0_11] : memref<1x2x8x16xf32, #tpu.memory_space<vmem>>, vector<1x1x8x16xf32>
    %9 = vector.shape_cast %8 : vector<1x1x8x16xf32> to vector<8x16xf32>
    %cst_12 = arith.constant dense<0.000000e+00> : vector<16x16xf32>
    %10 = tpu.matmul %0, %9, %cst_12 {dimension_numbers = #tpu.dot_dimension_numbers<[1], [0], [0], [1], [0, 0, 1, 1], [], []>} : vector<16x8xf32>, vector<8x16xf32>, vector<16x16xf32> -> vector<16x16xf32>
    %c0_13 = arith.constant 0 : index
    %c1_14 = arith.constant 1 : index
    %c0_15 = arith.constant 0 : index
    %c0_16 = arith.constant 0 : index
    %11 = vector.load %arg2[%c0_13, %c1_14, %c0_15, %c0_16] : memref<1x2x16x16xf32, #tpu.memory_space<vmem>>, vector<1x1x16x16xf32>
    %12 = vector.shape_cast %11 : vector<1x1x16x16xf32> to vector<16x16xf32>
    %13 = arith.subf %12, %10 : vector<16x16xf32>
    %14 = arith.mulf %13, %13 : vector<16x16xf32>
    %15 = arith.addf %7, %14 : vector<16x16xf32>
    %c0_17 = arith.constant 0 : index
    %c0_18 = arith.constant 0 : index
    %16 = vector.load %arg5[%c0_17, %c0_18] : memref<1x16xf32, #tpu.memory_space<vmem>>, vector<1x16xf32>
    %17 = vector.broadcast %16 : vector<1x16xf32> to vector<16x16xf32>
    %18 = arith.mulf %15, %17 : vector<16x16xf32>
    %c0_i32 = arith.constant 0 : i32
    %19 = arith.cmpi eq, %arg1, %c0_i32 : i32
    %c0_i32_19 = arith.constant 0 : i32
    %20 = arith.cmpi eq, %arg1, %c0_i32_19 : i32
    %21 = arith.ori %19, %20 : i1
    %true = arith.constant true
    %22 = arith.xori %21, %true : i1
    %23 = arith.extui %22 : i1 to i32
    %c0_i32_20 = arith.constant 0 : i32
    %24 = arith.cmpi ne, %23, %c0_i32_20 : i32
    scf.if %24 {
      %27 = math.sqrt %18 : vector<16x16xf32>
      %cst_22 = arith.constant dense<0.000000e+00> : vector<16xf32>
      %28 = vector.multi_reduction <add>, %27, %cst_22 [0] : vector<16x16xf32> to vector<16xf32>
      %29 = vector.shape_cast %28 : vector<16xf32> to vector<1x16xf32>
      %c0_23 = arith.constant 0 : index
      %c0_24 = arith.constant 0 : index
      %c0_25 = arith.constant 0 : index
      %c0_26 = arith.constant 0 : index
      %30 = vector.load %arg6[%c0_23, %c0_24, %c0_25, %c0_26] : memref<1x1x1x16xf32, #tpu.memory_space<vmem>>, vector<1x1x1x16xf32>
      %31 = vector.shape_cast %30 : vector<1x1x1x16xf32> to vector<1x16xf32>
      %32 = vector.shape_cast %29 : vector<1x16xf32> to vector<1x1x1x16xf32>
      tpu.vector_store %arg6[%c0_23, %c0_24, %c0_25, %c0_26], %32 {strides = array<i32>} : memref<1x1x1x16xf32, #tpu.memory_space<vmem>>, vector<1x1x1x16xf32>,
    } else {
    }
    %25 = arith.extui %21 : i1 to i32
    %c0_i32_21 = arith.constant 0 : i32
    %26 = arith.cmpi ne, %25, %c0_i32_21 : i32
    scf.if %26 {
      %c0_i32_22 = arith.constant 0 : i32
      %27 = arith.addi %arg1, %c0_i32_22 : i32
      %c16_i32 = arith.constant 16 : i32
      %28 = arith.muli %27, %c16_i32 : i32
      %29 = tpu.iota {dimensions = array<i32: 0>} : vector<16x16xi32>
      %30 = vector.broadcast %28 : i32 to vector<16x16xi32>
      %31 = arith.addi %30, %29 : vector<16x16xi32>
      %c1_i32 = arith.constant 1 : i32
      %32 = vector.broadcast %c1_i32 : i32 to vector<16x16xi32>
      %33 = arith.cmpi sge, %31, %32 : vector<16x16xi32>
      %c15_i32 = arith.constant 15 : i32
      %34 = vector.broadcast %c15_i32 : i32 to vector<16x16xi32>
      %35 = arith.cmpi slt, %31, %34 : vector<16x16xi32>
      %36 = arith.andi %33, %35 : vector<16x16xi1>
      %cst_23 = arith.constant 0.000000e+00 : f32
      %37 = vector.broadcast %cst_23 : f32 to vector<16x16xf32>
      %38 = arith.select %36, %18, %37 : vector<16x16xi1>, vector<16x16xf32>
      %39 = math.sqrt %38 : vector<16x16xf32>
      %cst_24 = arith.constant dense<0.000000e+00> : vector<16xf32>
      %40 = vector.multi_reduction <add>, %39, %cst_24 [0] : vector<16x16xf32> to vector<16xf32>
      %41 = vector.shape_cast %40 : vector<16xf32> to vector<1x16xf32>
      %c0_25 = arith.constant 0 : index
      %c0_26 = arith.constant 0 : index
      %c0_27 = arith.constant 0 : index
      %c0_28 = arith.constant 0 : index
      %42 = vector.load %arg6[%c0_25, %c0_26, %c0_27, %c0_28] : memref<1x1x1x16xf32, #tpu.memory_space<vmem>>, vector<1x1x1x16xf32>
      %43 = vector.shape_cast %42 : vector<1x1x1x16xf32> to vector<1x16xf32>
      %44 = vector.shape_cast %41 : vector<1x16xf32> to vector<1x1x1x16xf32>
      tpu.vector_store %arg6[%c0_25, %c0_26, %c0_27, %c0_28], %44 {strides = array<i32>} : memref<1x1x1x16xf32, #tpu.memory_space<vmem>>, vector<1x1x1x16xf32>,
    } else {
    }
    return
  }
  func.func @transform_0(%arg0: i32, %arg1: i32) -> (i32, i32, i32, i32) {
    %c0_i32 = arith.constant 0 : i32
    %0 = arith.addi %arg1, %c0_i32 : i32
    %c0_i32_0 = arith.constant 0 : i32
    %c0_i32_1 = arith.constant 0 : i32
    %c0_i32_2 = arith.constant 0 : i32
    return %arg0, %c0_i32_0, %0, %c0_i32_1 : i32, i32, i32, i32
  }
  func.func @transform_1(%arg0: i32, %arg1: i32) -> (i32, i32, i32, i32) {
    %c0_i32 = arith.constant 0 : i32
    %c0_i32_0 = arith.constant 0 : i32
    %c0_i32_1 = arith.constant 0 : i32
    %c0_i32_2 = arith.constant 0 : i32
    return %arg0, %c0_i32, %c0_i32_0, %c0_i32_1 : i32, i32, i32, i32
  }
  func.func @transform_2(%arg0: i32, %arg1: i32) -> (i32, i32) {
    %c0_i32 = arith.constant 0 : i32
    %0 = arith.addi %arg1, %c0_i32 : i32
    %c0_i32_0 = arith.constant 0 : i32
    %c0_i32_1 = arith.constant 0 : i32
    return %0, %c0_i32_0 : i32, i32
  }
  func.func @transform_3(%arg0: i32, %arg1: i32) -> (i32, i32) {
    %c0_i32 = arith.constant 0 : i32
    %c0_i32_0 = arith.constant 0 : i32
    %c0_i32_1 = arith.constant 0 : i32
    return %c0_i32, %c0_i32_0 : i32, i32
  }
  func.func @transform_4(%arg0: i32, %arg1: i32) -> (i32, i32, i32, i32) {
    %c0_i32 = arith.constant 0 : i32
    %c0_i32_0 = arith.constant 0 : i32
    %c0_i32_1 = arith.constant 0 : i32
    return %arg0, %arg1, %c0_i32, %c0_i32_0 : i32, i32, i32, i32
  }
}

</mosaic_0001>

<llo_original>
// kernel: tpu_custom_call.1
$region0: #{tpu_custom_call.1}
  #allocation0 [shape = 'u32[]', space=smem, size = 0x4, offset = 0x4, fixed_abs, tag = 'smem constant byte address 0x4 - core index']
  #allocation1 [shape = 'u32[72,128]{1,0:T(1,128)}', space=vmem, size = 0x9000, scoped, tag = 'internal scratch']
  %s0 = inlined_call_operand.hbm [shape: f32[2,2,16,16], index: 0, kind: input, shape index: {}]
  %s1 = inlined_call_operand.hbm [shape: f32[2,2,8,16], index: 1, kind: input, shape index: {}]
  %s2 = inlined_call_operand.vmem [shape: f32[16,8], index: 2, kind: input, shape index: {}]
  %s3 = inlined_call_operand.vmem [shape: f32[1,16], index: 3, kind: input, shape index: {}]
  %s4 = inlined_call_operand.hbm [shape: f32[2,1,1,16], index: 4, kind: output, shape index: {}]
  %s5 = sld [smem:[#allocation0]]
  $region65: #{tpu_custom_call.1} parent=0
    _
  %s7 = ssub.s32 1, %s5
  %s8 = scalar_select 0, %s7, %s5
  $region1: #{tpu_custom_call.1} parent=0
    #allocation2 [shape = 'u8[32768]{0}', space=vmem, size = 0x8000, scoped, tag = 'input window, operand 0']
    #allocation3 [shape = 's32[2]{0}', space=sflag, size = 0x8, scoped, tag = 'scoped memory for tpu_custom_call.1']
    #allocation4 [shape = 's32[2]{0}', space=sflag, size = 0x8, scoped, tag = 'scoped memory for tpu_custom_call.1']
    #allocation5 [shape = 'u8[16384]{0}', space=vmem, size = 0x4000, scoped, tag = 'input window, operand 1']
    #allocation6 [shape = 's32[2]{0}', space=sflag, size = 0x8, scoped, tag = 'scoped memory for tpu_custom_call.1']
    #allocation7 [shape = 'u8[1024]{0}', space=vmem, size = 0x400, scoped, tag = 'output window, operand 0']
    %9 = vsyncpa [#allocation3], 0
    %s10 = scalar_lea.sflag [#allocation3], 1
    %11 = vsyncpa %s10, 0
    %12 = vsyncpa [#allocation6], 0
    %s13 = scalar_lea.sflag [#allocation6], 1
    %14 = vsyncpa %s13, 0
    %15 = vsyncpa [#allocation4], 0
    %s16 = scalar_lea.sflag [#allocation4], 1
    %17 = vsyncpa %s16, 0
    loop: start=0, step=1, limit=4
    $region2: #{tpu_custom_call.1} parent=1 // loop_pre_header
      _
    $region3: #{tpu_custom_call.1} parent=1 // loop_header
      %s19 = sphi 0, %s23
      %p20 = scmp.ge.s32.totalorder %s19, 4
      %s26 = sphi 0, %s38
      %s27 = sphi 0, %s34
      %s28 = sphi 0, %s26
      %s29 = sphi 0, %s27
      %s30 = sphi 0, %s28
      %s31 = sphi 0, %s29
      %s43 = sphi 0, %s45
      %s46 = sphi 0, %s43
      %s47 = sphi 0, %s46
      %s63 = sphi 0, %s47
      %s69 = sphi 0, %s71
      %s72 = sphi 0, %s69
      %s73 = sphi 0, %s72
      %s89 = sphi 0, %s73
      %s95 = sphi 0, %s97
      %s98 = sphi 0, %s95
      %s99 = sphi 0, %s98
      %s115 = sphi 0, %s99
      %s119 = sphi 0, %s119
      %s121 = sphi 0, %s119
      %s122 = sphi 0, %s121
      %s136 = sphi 0, %s122
      %s144 = sphi 0, %s146
      %s147 = sphi 0, %s144
      %s148 = sphi 0, %s147
      %s164 = sphi 0, %s148
    $region4: #{tpu_custom_call.1} parent=1 // loop_header_branch
      %22 = sbr.rel (%p20) target = $region8
    $region5: #{tpu_custom_call.1} parent=1 // loop_body
      %s24 = ssub.s32 %s19, 1
      %s25 = ssub.s32 %s19, 2
      %s32 = sadd.s32 1, %s27
      %p33 = scmp.ge.s32.totalorder %s32, 1
      %s34 = scalar_select %p33, 0, %s32
      %s35 = sadd.s32 1, %s26
      %s36 = scalar_select %p33, %s35, %s26
      %p37 = scmp.ge.s32.totalorder %s36, 2
      %s38 = scalar_select %p37, 0, %s36
      %s39 = ssub.s32 %s26, %s38
      %s40 = ssub.s32 %s27, %s34
      %s41 = sor.u32 %s39, %s40
      %p42 = scmp.eq.s32.totalorder %s41, 0
      %s44 = sadd.s32 %s43, 1
      %s45 = scalar_select %p42, %s43, %s44
      %p48 = pneg %p42
      %p49 = scmp.eq.s32.totalorder %s19, 1
      %p50 = por %p48, %p49
      %p51 = scmp.ne.s32.totalorder %s43, %s46
      %p52 = scmp.eq.s32.totalorder %s19, 0
      %p53 = por %p51, %p52
      %p54 = scmp.ne.s32.totalorder %s43, %s46
      %p55 = scmp.eq.s32.totalorder %s24, 1
      %p56 = por %p54, %p55
      %p57 = scmp.ne.s32.totalorder %s46, %s47
      %p58 = scmp.eq.s32.totalorder %s24, 0
      %p59 = por %p57, %p58
      %p60 = scmp.ne.s32.totalorder %s46, %s47
      %p61 = scmp.eq.s32.totalorder %s25, 1
      %p62 = por %p60, %p61
      %p64 = scmp.ne.s32.totalorder %s47, %s63
      %p65 = scmp.eq.s32.totalorder %s25, 0
      %p66 = por %p64, %p65
      %s67 = ssub.s32 %s26, %s38
      %p68 = scmp.eq.s32.totalorder %s67, 0
      %s70 = sadd.s32 %s69, 1
      %s71 = scalar_select %p68, %s69, %s70
      %p74 = pneg %p68
      %p75 = scmp.eq.s32.totalorder %s19, 1
      %p76 = por %p74, %p75
      %p77 = scmp.ne.s32.totalorder %s69, %s72
      %p78 = scmp.eq.s32.totalorder %s19, 0
      %p79 = por %p77, %p78
      %p80 = scmp.ne.s32.totalorder %s69, %s72
      %p81 = scmp.eq.s32.totalorder %s24, 1
      %p82 = por %p80, %p81
      %p83 = scmp.ne.s32.totalorder %s72, %s73
      %p84 = scmp.eq.s32.totalorder %s24, 0
      %p85 = por %p83, %p84
      %p86 = scmp.ne.s32.totalorder %s72, %s73
      %p87 = scmp.eq.s32.totalorder %s25, 1
      %p88 = por %p86, %p87
      %p90 = scmp.ne.s32.totalorder %s73, %s89
      %p91 = scmp.eq.s32.totalorder %s25, 0
      %p92 = por %p90, %p91
      %s93 = ssub.s32 %s27, %s34
      %p94 = scmp.eq.s32.totalorder %s93, 0
      %s96 = sadd.s32 %s95, 1
      %s97 = scalar_select %p94, %s95, %s96
      %p100 = pneg %p94
      %p101 = scmp.eq.s32.totalorder %s19, 1
      %p102 = por %p100, %p101
      %p103 = scmp.ne.s32.totalorder %s95, %s98
      %p104 = scmp.eq.s32.totalorder %s19, 0
      %p105 = por %p103, %p104
      %p106 = scmp.ne.s32.totalorder %s95, %s98
      %p107 = scmp.eq.s32.totalorder %s24, 1
      %p108 = por %p106, %p107
      %p109 = scmp.ne.s32.totalorder %s98, %s99
      %p110 = scmp.eq.s32.totalorder %s24, 0
      %p111 = por %p109, %p110
      %p112 = scmp.ne.s32.totalorder %s98, %s99
      %p113 = scmp.eq.s32.totalorder %s25, 1
      %p114 = por %p112, %p113
      %p116 = scmp.ne.s32.totalorder %s99, %s115
      %p117 = scmp.eq.s32.totalorder %s25, 0
      %p118 = por %p116, %p117
      %s120 = sadd.s32 %s119, 1
      %p123 = scmp.eq.s32.totalorder %s19, 1
      %p124 = scmp.ne.s32.totalorder %s119, %s121
      %p125 = scmp.eq.s32.totalorder %s19, 0
      %p126 = por %p124, %p125
      %p127 = scmp.ne.s32.totalorder %s119, %s121
      %p128 = scmp.eq.s32.totalorder %s24, 1
      %p129 = por %p127, %p128
      %p130 = scmp.ne.s32.totalorder %s121, %s122
      %p131 = scmp.eq.s32.totalorder %s24, 0
      %p132 = por %p130, %p131
      %p133 = scmp.ne.s32.totalorder %s121, %s122
      %p134 = scmp.eq.s32.totalorder %s25, 1
      %p135 = por %p133, %p134
      %p137 = scmp.ne.s32.totalorder %s122, %s136
      %p138 = scmp.eq.s32.totalorder %s25, 0
      %p139 = por %p137, %p138
      %s140 = ssub.s32 %s26, %s38
      %s141 = ssub.s32 %s27, %s34
      %s142 = sor.u32 %s140, %s141
      %p143 = scmp.eq.s32.totalorder %s142, 0
      %s145 = sadd.s32 %s144, 1
      %s146 = scalar_select %p143, %s144, %s145
      %p149 = pneg %p143
      %p150 = scmp.eq.s32.totalorder %s19, 1
      %p151 = por %p149, %p150
      %p152 = scmp.ne.s32.totalorder %s144, %s147
      %p153 = scmp.eq.s32.totalorder %s19, 0
      %p154 = por %p152, %p153
      %p155 = scmp.ne.s32.totalorder %s144, %s147
      %p156 = scmp.eq.s32.totalorder %s24, 1
      %p157 = por %p155, %p156
      %p158 = scmp.ne.s32.totalorder %s147, %s148
      %p159 = scmp.eq.s32.totalorder %s24, 0
      %p160 = por %p158, %p159
      %p161 = scmp.ne.s32.totalorder %s147, %s148
      %p162 = scmp.eq.s32.totalorder %s25, 1
      %p163 = por %p161, %p162
      %p165 = scmp.ne.s32.totalorder %s148, %s164
      %p166 = scmp.eq.s32.totalorder %s25, 0
      %p167 = por %p165, %p166
      %p168 = scmp.le.s32.totalorder 1, %s19
      %p169 = scmp.lt.s32.totalorder %s19, 3
      %p170 = pnand %p168, %p169
      %p171 = pneg %p170
      // Predicated region
      $region9: #{tpu_custom_call.1} parent=5 // pred_check
        _
      $region10: #{tpu_custom_call.1} parent=5 // pred_check_branch
        %173 = sbr.rel (%p170) target = $region12
      $region11: #{tpu_custom_call.1} parent=5 // pred_region
        %s174 = ssub.s32 %s19, 1
        // Predicated region
        $region13: #{tpu_custom_call.1} parent=11 // pred_check
          %p175 = pneg %p111
        $region14: #{tpu_custom_call.1} parent=11 // pred_check_branch
          %177 = sbr.rel (%p175) target = $region16
        $region15: #{tpu_custom_call.1} parent=11 // pred_region
          %s178 = smul.u32 2, %s29
          %p179 = scmp.lt.s32.totalorder %s178, 1
          %s180 = scalar_select %p179, %s178, 1
          %s181 = smul.addr %s180, 8
          %s182 = scalar_lea.vmem %s2, %s181
          %s183 = smul.u32 2, %s29
        $region16: #{tpu_custom_call.1} parent=11 // pred_fallthru
          _
        // Predicated region
        $region17: #{tpu_custom_call.1} parent=11 // pred_check
          %p184 = pneg %p132
        $region18: #{tpu_custom_call.1} parent=11 // pred_check_branch
          %186 = sbr.rel (%p184) target = $region20
        $region19: #{tpu_custom_call.1} parent=11 // pred_region
          _
        $region20: #{tpu_custom_call.1} parent=11 // pred_fallthru
          _
      $region12: #{tpu_custom_call.1} parent=5 // pred_fallthru
        _
      %p187 = scmp.lt.s32.totalorder %s19, 2
      // Predicated region
      $region21: #{tpu_custom_call.1} parent=5 // pred_check
        %p188 = pneg %p187
      $region22: #{tpu_custom_call.1} parent=5 // pred_check_branch
        %190 = sbr.rel (%p188) target = $region24
      $region23: #{tpu_custom_call.1} parent=5 // pred_region
        // Predicated region
        $region25: #{tpu_custom_call.1} parent=23 // pred_check
          %p191 = pneg %p53
        $region26: #{tpu_custom_call.1} parent=23 // pred_check_branch
          %193 = sbr.rel (%p191) target = $region28
        $region27: #{tpu_custom_call.1} parent=23 // pred_region
          %s194 = sand.u32 %s43, 1
          %s195 = scalar_lea.sflag [#allocation3], %s194
          %s196 = sand.u32 %s43, 1
          %s197 = smul.addr %s196, 32
          %s198 = scalar_lea.vmem [#allocation2], %s197
          %s199 = smul.u32 2, %s27
          %201 = vsyncadd %s195, 0
          %s202 = smul.addr %s26, 4
          %s203 = sadd.s32 %s199, %s202
          %s204 = smul.addr %s203, 8
          %s205 = scalar_lea.hbm %s0, %s204
          %s206 = sshll.u32 %s205, 4
          %s207 = int_to_ptr.hbm [resolvable:$true] %s206
          %s208 = sshll.u32 %s198, 4
          %s209 = int_to_ptr.vmem [resolvable:$true] %s208
          %214 = dma.hbm_to_vmem [thread:$0]  %s207, 512, %s209, %s195, 128, 128, 8
        $region28: #{tpu_custom_call.1} parent=23 // pred_fallthru
          _
        // Predicated region
        $region29: #{tpu_custom_call.1} parent=23 // pred_check
          %p215 = pneg %p79
        $region30: #{tpu_custom_call.1} parent=23 // pred_check_branch
          %217 = sbr.rel (%p215) target = $region32
        $region31: #{tpu_custom_call.1} parent=23 // pred_region
          %s218 = sand.u32 %s69, 1
          %s219 = scalar_lea.sflag [#allocation6], %s218
          %s220 = sand.u32 %s69, 1
          %s221 = smul.addr %s220, 16
          %s222 = scalar_lea.vmem [#allocation5], %s221
          %224 = vsyncadd %s219, 0
          %s225 = smul.addr %s26, 2
          %s226 = smul.addr %s225, 8
          %s227 = scalar_lea.hbm %s1, %s226
          %s228 = sshll.u32 %s227, 4
          %s229 = int_to_ptr.hbm [resolvable:$true] %s228
          %s230 = sshll.u32 %s222, 4
          %s231 = int_to_ptr.vmem [resolvable:$true] %s230
          %236 = dma.hbm_to_vmem [thread:$0]  %s229, 256, %s231, %s219, 128, 128, 8
        $region32: #{tpu_custom_call.1} parent=23 // pred_fallthru
          _
      $region24: #{tpu_custom_call.1} parent=5 // pred_fallthru
        _
      %p237 = scmp.le.s32.totalorder 1, %s19
      %p238 = scmp.lt.s32.totalorder %s19, 3
      %p239 = pnand %p237, %p238
      %p240 = pneg %p239
      // Predicated region
      $region33: #{tpu_custom_call.1} parent=5 // pred_check
        _
      $region34: #{tpu_custom_call.1} parent=5 // pred_check_branch
        %242 = sbr.rel (%p239) target = $region36
      $region35: #{tpu_custom_call.1} parent=5 // pred_region
        %s243 = ssub.s32 %s19, 1
        %s244 = sand.u32 %s46, 1
        %s245 = scalar_lea.sflag [#allocation3], %s244
        %s246 = sand.u32 %s46, 1
        %s247 = smul.addr %s246, 32
        %s248 = scalar_lea.vmem [#allocation2], %s247
        // Predicated region
        $region37: #{tpu_custom_call.1} parent=35 // pred_check
          %p249 = pneg %p59
        $region38: #{tpu_custom_call.1} parent=35 // pred_check_branch
          %251 = sbr.rel (%p249) target = $region40
        $region39: #{tpu_custom_call.1} parent=35 // pred_region
          %253 = dma.done %s245, 512
        $region40: #{tpu_custom_call.1} parent=35 // pred_fallthru
          _
        %s254 = sand.u32 %s72, 1
        %s255 = scalar_lea.sflag [#allocation6], %s254
        %s256 = sand.u32 %s72, 1
        %s257 = smul.addr %s256, 16
        %s258 = scalar_lea.vmem [#allocation5], %s257
        // Predicated region
        $region41: #{tpu_custom_call.1} parent=35 // pred_check
          %p259 = pneg %p85
        $region42: #{tpu_custom_call.1} parent=35 // pred_check_branch
          %261 = sbr.rel (%p259) target = $region44
        $region43: #{tpu_custom_call.1} parent=35 // pred_region
          %263 = dma.done %s255, 256
        $region44: #{tpu_custom_call.1} parent=35 // pred_fallthru
          _
        %s264 = sand.u32 %s46, 1
        %s265 = scalar_lea.sflag [#allocation3], %s264
        %s266 = sand.u32 %s46, 1
        %s267 = smul.addr %s266, 32
        %s268 = scalar_lea.vmem [#allocation2], %s267
        %p269 = pneg %p59
        %p270 = pneg %p56
        %s271 = sand.u32 %s72, 1
        %s272 = scalar_lea.sflag [#allocation6], %s271
        %s273 = sand.u32 %s72, 1
        %s274 = smul.addr %s273, 16
        %s275 = scalar_lea.vmem [#allocation5], %s274
        %p276 = pneg %p85
        %p277 = pneg %p82
        %s278 = smul.u32 2, %s29
        %p279 = scmp.lt.s32.totalorder %s278, 1
        %s280 = scalar_select %p279, %s278, 1
        %s281 = smul.addr %s280, 8
        %s282 = scalar_lea.vmem %s2, %s281
        %p283 = pneg %p111
        %p284 = pneg %p108
        %p285 = pneg %p132
        %p286 = pneg %p129
        %p287 = pneg %p160
        %p288 = pneg %p157
        %s289 = sand.u32 %s147, 1
        %s290 = scalar_lea.sflag [#allocation4], %s289
        %s291 = sand.u32 %s147, 1
        %s292 = scalar_lea.vmem [#allocation7], %s291
        %s293 = smul.u32 2, %s29
        %s294 = smul.u32 2, %s29
        %p295 = scmp.lt.s32.totalorder %s294, 1
        %s296 = scalar_select %p295, %s294, 1
        %s297 = smul.addr %s296, 8
        %s298 = scalar_lea.vmem %s2, %s297
        %s299 = smul.u32 2, %s29
        %v300 = vld [vmem:[%s298] sm:$0xff]
        %v301 = vld [vmem:[%s298 + $0x8] sm:$0xff]
        %v302 = vld [vmem:[%s258] sm:$0xff]
        %vm303 = vcmask 64512
        %v305 = vsel %vm303, %v300, 0
        %v308 = vsel %vm303, %v301, 0
        %310 = vmatpush.msra.mxu0 0.0
        %311 = vmatpush.msra.mxu0 0.0
        %312 = vmatpush.msra.mxu0 0.0
        %313 = vmatpush.msra.mxu0 0.0
        %314 = vmatpush.msra.mxu0 0.0
        %315 = vmatpush.msra.mxu0 0.0
        %316 = vmatpush.msra.mxu0 0.0
        %317 = vmatpush.msra.mxu0 0.0
        %318 = vmatpush.msra.mxu0 0.0
        %319 = vmatpush.msra.mxu0 0.0
        %320 = vmatpush.msra.mxu0 0.0
        %321 = vmatpush.msra.mxu0 0.0
        %322 = vmatpush.msra.mxu0 0.0
        %323 = vmatpush.msra.mxu0 0.0
        %324 = vmatpush.msra.mxu0 0.0
        %325 = vmatpush.msra.mxu0 %v302
        %326 = vmatmul.f32.gmra.mxu0 %v305
        %v327 = vpop.f32.mrf.mxu0
        %v328 = vadd.f32 0.0, %v327
        %329 = vmatmul.f32.gmra.mxu0 %v308
        %v330 = vpop.f32.mrf.mxu0
        %v331 = vadd.f32 0.0, %v330
        %332 = vdwg.mxu0
        %v333 = vld [vmem:[%s248] sm:$0xff]
        %v334 = vld [vmem:[%s248 + $0x8] sm:$0xff]
        %v335 = vsub.f32 %v333, %v328
        %v336 = vsub.f32 %v334, %v331
        %v337 = vmul.f32 %v335, %v335
        %v338 = vmul.f32 %v336, %v336
        %s339 = scalar_lea.vmem %s258, 8 [#allocation5]
        %v340 = vld [vmem:[%s339] sm:$0xff]
        %341 = vmatpush.msra.mxu0 0.0
        %342 = vmatpush.msra.mxu0 0.0
        %343 = vmatpush.msra.mxu0 0.0
        %344 = vmatpush.msra.mxu0 0.0
        %345 = vmatpush.msra.mxu0 0.0
        %346 = vmatpush.msra.mxu0 0.0
        %347 = vmatpush.msra.mxu0 0.0
        %348 = vmatpush.msra.mxu0 0.0
        %349 = vmatpush.msra.mxu0 0.0
        %350 = vmatpush.msra.mxu0 0.0
        %351 = vmatpush.msra.mxu0 0.0
        %352 = vmatpush.msra.mxu0 0.0
        %353 = vmatpush.msra.mxu0 0.0
        %354 = vmatpush.msra.mxu0 0.0
        %355 = vmatpush.msra.mxu0 0.0
        %356 = vmatpush.msra.mxu0 %v340
        %357 = vmatmul.f32.gmra.mxu0 %v305
        %v358 = vpop.f32.mrf.mxu0
        %v359 = vadd.f32 0.0, %v358
        %360 = vmatmul.f32.gmra.mxu0 %v308
        %v361 = vpop.f32.mrf.mxu0
        %v362 = vadd.f32 0.0, %v361
        %363 = vdwg.mxu0
        %s364 = scalar_lea.vmem %s248, 16 [#allocation2]
        %v365 = vld [vmem:[%s364] sm:$0xff]
        %v366 = vld [vmem:[%s364 + $0x8] sm:$0xff]
        %v367 = vsub.f32 %v365, %v359
        %v368 = vsub.f32 %v366, %v362
        %v369 = vmul.f32 %v367, %v367
        %v370 = vmul.f32 %v368, %v368
        %v371 = vadd.f32 %v337, %v369
        %v372 = vadd.f32 %v338, %v370
        %v373 = vld [vmem:[%s3] sm:$0x1]
        %v375 = vperm.slane %v373, 0
        %v377 = vmul.f32 %v371, %v375
        %v378 = vmul.f32 %v372, %v375
        %p379 = scmp.eq.s32.totalorder %s29, 0
        // Predicated region
        $region45: #{tpu_custom_call.1} parent=35 // pred_check
          %p380 = pneg %p379
        $region46: #{tpu_custom_call.1} parent=35 // pred_check_branch
          %382 = sbr.rel (%p380) target = $region48
        $region47: #{tpu_custom_call.1} parent=35 // pred_region
          %s383 = smul.u32 %s29, 16
          %v384 = vlaneseq
          %v385 = vshrl.u32 %v384, 7
          %v386 = vadd.s32 %v385, 8
          %v387 = vstv %s383
          %v388 = vadd.s32 %v387, %v385
          %v389 = vadd.s32 %v387, %v386
          %vm390 = vcmp.ge.s32.totalorder %v388, 1
          %vm391 = vcmp.ge.s32.totalorder %v389, 1
          %vm392 = vcmp.lt.s32.totalorder %v388, 15
          %vm393 = vcmp.lt.s32.totalorder %v389, 15
          %vm394 = vmand %vm390, %vm392
          %vm395 = vmand %vm391, %vm393
          %v396 = vsel %vm394, %v377, 0.0
          %v397 = vsel %vm395, %v378, 0.0
          %v398 = vrsqrt.pop %v396
          %v399 = vmul.f32 %v398, %v396
          %v400 = vmul.f32 %v399, %v398
          %v401 = vmul.f32 0.5, %v400
          %v402 = vsub.f32 1.5, %v401
          %v403 = vmul.f32 %v398, %v402
          %v404 = vmul.f32 %v396, %v403
          %vm405 = vcmp.eq.f32.partialorder %v396, inf
          %v406 = vsel %vm405, %v396, %v404
          %vm407 = vcmp.eq.f32.partialorder %v396, 0.0
          %v408 = vand.u32 %v396, 2147483648
          %v409 = vsel %vm407, %v408, %v406
          %v410 = vrsqrt.pop %v397
          %v411 = vmul.f32 %v410, %v397
          %v412 = vmul.f32 %v411, %v410
          %v413 = vmul.f32 0.5, %v412
          %v414 = vsub.f32 1.5, %v413
          %v415 = vmul.f32 %v410, %v414
          %v416 = vmul.f32 %v397, %v415
          %vm417 = vcmp.eq.f32.partialorder %v397, inf
          %v418 = vsel %vm417, %v397, %v416
          %vm419 = vcmp.eq.f32.partialorder %v397, 0.0
          %v420 = vand.u32 %v397, 2147483648
          %v421 = vsel %vm419, %v420, %v418
          %vm422 = vcmask 130048
          %v423 = vsel %vm422, %v409, 0.0
          %v424 = vsel %vm422, %v421, 0.0
          %v425 = vadd.f32 %v423, %v424
          %v426 = vrot.slane %v425, 4
          %v427 = vadd.f32 %v425, %v426
          %v428 = vrot.slane %v427, 2
          %v429 = vadd.f32 %v427, %v428
          %v430 = vrot.slane %v429, 1
          %v431 = vadd.f32 %v429, %v430
          %vm432 = vcmask 122880
          %433 = vst.msk [vmem:[%s292] sm:$0x1] %vm432, %v431
        $region48: #{tpu_custom_call.1} parent=35 // pred_fallthru
          _
        %p434 = pneg %p379
        // Predicated region
        $region49: #{tpu_custom_call.1} parent=35 // pred_check
          _
        $region50: #{tpu_custom_call.1} parent=35 // pred_check_branch
          %436 = sbr.rel (%p379) target = $region52
        $region51: #{tpu_custom_call.1} parent=35 // pred_region
          %v437 = vrsqrt.pop %v377
          %v438 = vmul.f32 %v437, %v377
          %v439 = vmul.f32 %v438, %v437
          %v440 = vmul.f32 0.5, %v439
          %v441 = vsub.f32 1.5, %v440
          %v442 = vmul.f32 %v437, %v441
          %v443 = vmul.f32 %v377, %v442
          %vm444 = vcmp.eq.f32.partialorder %v377, inf
          %v445 = vsel %vm444, %v377, %v443
          %vm446 = vcmp.eq.f32.partialorder %v377, 0.0
          %v447 = vand.u32 %v377, 2147483648
          %v448 = vsel %vm446, %v447, %v445
          %v449 = vrsqrt.pop %v378
          %v450 = vmul.f32 %v449, %v378
          %v451 = vmul.f32 %v450, %v449
          %v452 = vmul.f32 0.5, %v451
          %v453 = vsub.f32 1.5, %v452
          %v454 = vmul.f32 %v449, %v453
          %v455 = vmul.f32 %v378, %v454
          %vm456 = vcmp.eq.f32.partialorder %v378, inf
          %v457 = vsel %vm456, %v378, %v455
          %vm458 = vcmp.eq.f32.partialorder %v378, 0.0
          %v459 = vand.u32 %v378, 2147483648
          %v460 = vsel %vm458, %v459, %v457
          %vm461 = vcmask 130048
          %v462 = vsel %vm461, %v448, 0.0
          %v463 = vsel %vm461, %v460, 0.0
          %v464 = vadd.f32 %v462, %v463
          %v465 = vrot.slane %v464, 4
          %v466 = vadd.f32 %v464, %v465
          %v467 = vrot.slane %v466, 2
          %v468 = vadd.f32 %v466, %v467
          %v469 = vrot.slane %v468, 1
          %v470 = vadd.f32 %v468, %v469
          %vm471 = vcmask 122880
          %472 = vst.msk [vmem:[%s292] sm:$0x1] %vm471, %v470
        $region52: #{tpu_custom_call.1} parent=35 // pred_fallthru
          _
        %s473 = sand.u32 %s147, 1
        %s474 = scalar_lea.sflag [#allocation4], %s473
        %s475 = sand.u32 %s147, 1
        %s476 = scalar_lea.vmem [#allocation7], %s475
        // Predicated region
        $region53: #{tpu_custom_call.1} parent=35 // pred_check
          %p477 = pneg %p157
        $region54: #{tpu_custom_call.1} parent=35 // pred_check_branch
          %479 = sbr.rel (%p477) target = $region56
        $region55: #{tpu_custom_call.1} parent=35 // pred_region
          %481 = vsyncadd %s474, 0
          %s482 = sadd.s32 %s29, %s28
          %s483 = scalar_lea.hbm %s4, %s482
          %s485 = sshll.u32 %s476, 4
          %s486 = int_to_ptr.vmem [resolvable:$true] %s485
          %s487 = sshll.u32 %s483, 4
          %s488 = int_to_ptr.hbm [resolvable:$true] %s487
          %490 = dma.vmem_to_hbm [thread:$0]  %s486, 16, %s488, %s474
        $region56: #{tpu_custom_call.1} parent=35 // pred_fallthru
          _
      $region36: #{tpu_custom_call.1} parent=5 // pred_fallthru
        _
      %p491 = scmp.le.s32.totalorder 2, %s19
      // Predicated region
      $region57: #{tpu_custom_call.1} parent=5 // pred_check
        %p492 = pneg %p491
      $region58: #{tpu_custom_call.1} parent=5 // pred_check_branch
        %494 = sbr.rel (%p492) target = $region60
      $region59: #{tpu_custom_call.1} parent=5 // pred_region
        %s495 = ssub.s32 %s19, 2
        // Predicated region
        $region61: #{tpu_custom_call.1} parent=59 // pred_check
          %p496 = pneg %p163
        $region62: #{tpu_custom_call.1} parent=59 // pred_check_branch
          %498 = sbr.rel (%p496) target = $region64
        $region63: #{tpu_custom_call.1} parent=59 // pred_region
          %s499 = sand.u32 %s148, 1
          %s500 = scalar_lea.sflag [#allocation4], %s499
          %s501 = sand.u32 %s148, 1
          %s502 = scalar_lea.vmem [#allocation7], %s501
          %504 = dma.done %s500, 16
        $region64: #{tpu_custom_call.1} parent=59 // pred_fallthru
          _
      $region60: #{tpu_custom_call.1} parent=5 // pred_fallthru
        _
    $region6: #{tpu_custom_call.1} parent=1 // loop_footer
      %s23 = sadd.s32 1, %s19
    $region7: #{tpu_custom_call.1} parent=1 // loop_footer_branch
      %18 = sbr.rel target = $region3
    $region8: #{tpu_custom_call.1} parent=1 // loop_exit
      _
    %505 = vsyncpa [#allocation3], 1
    %s506 = scalar_lea.sflag [#allocation3], 1
    %507 = vsyncpa %s506, 1
    %508 = vsyncpa [#allocation6], 1
    %s509 = scalar_lea.sflag [#allocation6], 1
    %510 = vsyncpa %s509, 1
    %511 = vsyncpa [#allocation4], 1
    %s512 = scalar_lea.sflag [#allocation4], 1
    %513 = vsyncpa %s512, 1

</llo_original>
